<compile_context>
chip_gen: v7x
topology: tpu7x:2x2x1
jax: 0.10.0
libtpu: 0.0.40
codegen_flags: <defaults>
</compile_context>

<pallas_src>
import functools
import math

import jax
import jax.numpy as jnp
from jax.experimental import pallas as pl
from jax.experimental.pallas import tpu as pltpu


# ---------------------------------------------------------------------------
# Tiling / VMEM helpers
# ---------------------------------------------------------------------------

def _round_up(x, m):
    return ((x + m - 1) // m) * m


def _pad_seq_len(s):
    """Pad the token axis so M = B*S tiles into large MXU-aligned row blocks
    (fixes the tm=8 degenerate tiling for prime S such as ViT's 197)."""
    if s >= 128:
        return _round_up(s, 128)
    return _round_up(s, 16)            # bf16 sublane-packing minimum


def _pick_tile(dim, preferred, aligns=(256, 128, 16, 8)):
    """Largest tile <= preferred that evenly divides `dim`, preferring coarse
    alignments (256 first: full-width MXU passes on v6e/v7x), else the full
    dim (a block equal to the array extent always satisfies the (8,128) rule)."""
    if dim <= preferred:
        return dim
    for align in aligns:
        t = (preferred // align) * align
        while t >= align:
            if dim % t == 0:
                return t
            t -= align
    return dim


@functools.lru_cache(maxsize=None)
def _vmem_limit_bytes():
    """Generation-aware scoped-VMEM budget: ~3/4 of physical VMEM
    (v5e/v6e 128 MiB -> 96 MiB, v7x 64 MiB -> 48 MiB), capped at 100 MiB."""
    try:
        cap = pltpu.get_tpu_info().vmem_capacity_bytes
    except Exception:          # API / device query unavailable -> assume 128 MiB
        cap = 128 * 1024 * 1024
    return int(min(cap * 3 // 4, 100 * 1024 * 1024))


def _mosaic_params(dimension_semantics):
    return pltpu.CompilerParams(dimension_semantics=dimension_semantics,
                                vmem_limit_bytes=_vmem_limit_bytes())


# ---------------------------------------------------------------------------
# Pallas kernels
# ---------------------------------------------------------------------------

def _matmul_kernel(*refs, activation, has_residual):
    """Tiled x @ w with K-accumulation; bias (+residual, +activation) epilogue."""
    if has_residual:
        x_ref, w_ref, b_ref, r_ref, o_ref, acc_ref = refs
    else:
        x_ref, w_ref, b_ref, o_ref, acc_ref = refs
        r_ref = None
    k = pl.program_id(2)

    @pl.when(k == 0)
    def _():
        acc_ref[...] = jnp.zeros_like(acc_ref)

    acc_ref[...] += jnp.dot(x_ref[...], w_ref[...],
                            preferred_element_type=jnp.float32)

    @pl.when(k == pl.num_programs(2) - 1)
    def _():
        y = acc_ref[...] + b_ref[...].astype(jnp.float32)
        if has_residual:
            y = y + r_ref[...].astype(jnp.float32)
        if activation == "gelu":
            y = jax.nn.gelu(y, approximate=False)   # exact erf, matches nn.GELU
        o_ref[...] = y.astype(o_ref.dtype)


def matmul_bias(x, w, b, residual=None, activation=None,
                tm=256, tn=512, tk=512):
    """x[M,K] @ w[K,N] + b[1,N] (+residual[M,N]) (+gelu) -> bf16[M,N], tiled."""
    M, K = x.shape
    N = w.shape[1]
    tm = _pick_tile(M, tm)
    tn = _pick_tile(N, tn)
    tk = _pick_tile(K, tk)
    in_specs = [
        pl.BlockSpec((tm, tk), lambda i, j, k: (i, k)),
        pl.BlockSpec((tk, tn), lambda i, j, k: (k, j)),
        pl.BlockSpec((1, tn), lambda i, j, k: (0, j)),
    ]
    args = [x.astype(jnp.bfloat16), w.astype(jnp.bfloat16), b]
    if residual is not None:
        in_specs.append(pl.BlockSpec((tm, tn), lambda i, j, k: (i, j)))
        args.append(residual.astype(jnp.bfloat16))
    return pl.pallas_call(
        functools.partial(_matmul_kernel, activation=activation,
                          has_residual=residual is not None),
        grid=(M // tm, N // tn, K // tk),
        in_specs=in_specs,
        out_specs=pl.BlockSpec((tm, tn), lambda i, j, k: (i, j)),
        out_shape=jax.ShapeDtypeStruct((M, N), jnp.bfloat16),
        scratch_shapes=[pltpu.VMEM((tm, tn), jnp.float32)],
        compiler_params=_mosaic_params(("parallel", "parallel", "arbitrary")),
    )(*args)


def _ln_matmul_kernel(x_ref, g_ref, b_ref, w_ref, bias_ref, o_ref, xn_ref, *,
                      eps, activation):
    """LayerNorm fused into the matmul prologue.  The normalized row tile is
    cached in VMEM (xn_ref) and reused for every N tile of the same row tile."""
    j = pl.program_id(1)

    @pl.when(j == 0)
    def _():
        x = x_ref[...].astype(jnp.float32)
        mean = jnp.mean(x, axis=-1, keepdims=True)
        var = jnp.mean(jnp.square(x - mean), axis=-1, keepdims=True)
        xn = (x - mean) * jax.lax.rsqrt(var + eps)
        xn = xn * g_ref[...].astype(jnp.float32) + b_ref[...].astype(jnp.float32)
        xn_ref[...] = xn.astype(jnp.bfloat16)

    y = jnp.dot(xn_ref[...], w_ref[...], preferred_element_type=jnp.float32)
    y = y + bias_ref[...].astype(jnp.float32)
    if activation == "gelu":
        y = jax.nn.gelu(y, approximate=False)
    o_ref[...] = y.astype(o_ref.dtype)


def fused_ln_matmul(x, gamma, beta, w, b, activation=None, eps=1e-6,
                    tm=256, tn=768):
    """act(LN(x) @ w + b).  LN needs the full row, so K stays un-tiled; LN is
    computed once per row tile (j == 0) and reused for all N tiles."""
    M, K = x.shape
    N = w.shape[1]
    tm = _pick_tile(M, tm)
    tn = _pick_tile(N, tn)
    return pl.pallas_call(
        functools.partial(_ln_matmul_kernel, eps=eps, activation=activation),
        grid=(M // tm, N // tn),
        in_specs=[
            pl.BlockSpec((tm, K), lambda i, j: (i, 0)),
            pl.BlockSpec((1, K), lambda i, j: (0, 0)),
            pl.BlockSpec((1, K), lambda i, j: (0, 0)),
            pl.BlockSpec((K, tn), lambda i, j: (0, j)),
            pl.BlockSpec((1, tn), lambda i, j: (0, j)),
        ],
        out_specs=pl.BlockSpec((tm, tn), lambda i, j: (i, j)),
        out_shape=jax.ShapeDtypeStruct((M, N), jnp.bfloat16),
        scratch_shapes=[pltpu.VMEM((tm, K), jnp.bfloat16)],
        compiler_params=_mosaic_params(("parallel", "arbitrary")),
    )(x.astype(jnp.bfloat16), gamma, beta, w.astype(jnp.bfloat16), b)


def _mlp_block_kernel(x_ref, g_ref, b_ref, w1_ref, b1_ref, w2_ref, b2_ref,
                      o_ref, *, eps):
    """Fused transformer MLP: out = x + W2(gelu(W1(LN(x)))) — the [tm, H] hidden
    activation never leaves VMEM."""
    x = x_ref[...].astype(jnp.float32)
    mean = jnp.mean(x, axis=-1, keepdims=True)
    var = jnp.mean(jnp.square(x - mean), axis=-1, keepdims=True)
    xn = (x - mean) * jax.lax.rsqrt(var + eps)
    xn = xn * g_ref[...].astype(jnp.float32) + b_ref[...].astype(jnp.float32)
    h = jnp.dot(xn.astype(jnp.bfloat16), w1_ref[...],
                preferred_element_type=jnp.float32)
    h = jax.nn.gelu(h + b1_ref[...].astype(jnp.float32), approximate=False)
    y = jnp.dot(h.astype(jnp.bfloat16), w2_ref[...],
                preferred_element_type=jnp.float32)
    y = y + b2_ref[...].astype(jnp.float32)
    o_ref[...] = (x + y).astype(o_ref.dtype)


def fused_mlp_block(x, gamma, beta, w1, b1, w2, b2, eps=1e-6, tm=256):
    M, D = x.shape
    H = w1.shape[1]
    tm = _pick_tile(M, tm)
    return pl.pallas_call(
        functools.partial(_mlp_block_kernel, eps=eps),
        grid=(M // tm,),
        in_specs=[
            pl.BlockSpec((tm, D), lambda i: (i, 0)),
            pl.BlockSpec((1, D), lambda i: (0, 0)),
            pl.BlockSpec((1, D), lambda i: (0, 0)),
            pl.BlockSpec((D, H), lambda i: (0, 0)),
            pl.BlockSpec((1, H), lambda i: (0, 0)),
            pl.BlockSpec((H, D), lambda i: (0, 0)),
            pl.BlockSpec((1, D), lambda i: (0, 0)),
        ],
        out_specs=pl.BlockSpec((tm, D), lambda i: (i, 0)),
        out_shape=jax.ShapeDtypeStruct((M, D), jnp.bfloat16),
        compiler_params=_mosaic_params(("parallel",)),
    )(x.astype(jnp.bfloat16), gamma, beta,
      w1.astype(jnp.bfloat16), b1, w2.astype(jnp.bfloat16), b2)


def _fused_mlp_vmem_bytes(tm, D, H):
    """Approximate VMEM footprint of the fused MLP kernel (double-buffered
    blocks + fp32 intermediates)."""
    blocks = 2 * (2 * tm * D) * 2            # x + out blocks, bf16, 2 buffers
    weights = 2 * (D * H + H * D) * 2        # w1 + w2, bf16, 2 buffers
    params = 4 * (3 * D + H) * 2             # gamma/beta/b1/b2 fp32, 2 buffers
    interm = 4 * tm * (H + 2 * D)            # fp32 hidden + LN/residual temps
    return blocks + weights + params + interm


def mlp_block(x, gamma, beta, w1, b1, w2, b2, eps, tm=256):
    """Whole-MLP fusion whenever the generation's VMEM budget allows (ViT-B/L on
    v5e/v6e, ViT-B on v7x); otherwise two fused calls (LN+W1+GELU, then W2 with
    bias+residual epilogue)."""
    M, D = x.shape
    H = w1.shape[1]
    tm_eff = _pick_tile(M, tm)
    if _fused_mlp_vmem_bytes(tm_eff, D, H) <= int(0.8 * _vmem_limit_bytes()):
        return fused_mlp_block(x, gamma, beta, w1, b1, w2, b2, eps=eps, tm=tm)
    # TODO(synk): single-buffer the constant weight blocks (pl.Buffered(1)) to
    # widen this gate on v7x once validated on the deployed jax version.
    h = fused_ln_matmul(x, gamma, beta, w1, b1, activation="gelu", eps=eps)
    return matmul_bias(h, w2, b2, residual=x)


def _layernorm_kernel(x_ref, g_ref, b_ref, o_ref, *, eps):
    x = x_ref[...].astype(jnp.float32)
    mean = jnp.mean(x, axis=-1, keepdims=True)
    var = jnp.mean(jnp.square(x - mean), axis=-1, keepdims=True)
    y = (x - mean) * jax.lax.rsqrt(var + eps)
    y = y * g_ref[...].astype(jnp.float32) + b_ref[...].astype(jnp.float32)
    o_ref[...] = y.astype(o_ref.dtype)


def layernorm(x, gamma, beta, eps=1e-6, tm=256):
    orig = x.shape
    D = orig[-1]
    M = math.prod(orig[:-1])
    tm = _pick_tile(M, tm)
    out = pl.pallas_call(
        functools.partial(_layernorm_kernel, eps=eps),
        grid=(M // tm,),
        in_specs=[pl.BlockSpec((tm, D), lambda i: (i, 0)),
                  pl.BlockSpec((1, D), lambda i: (0, 0)),
                  pl.BlockSpec((1, D), lambda i: (0, 0))],
        out_specs=pl.BlockSpec((tm, D), lambda i: (i, 0)),
        out_shape=jax.ShapeDtypeStruct((M, D), jnp.bfloat16),
        compiler_params=_mosaic_params(("parallel",)),
    )(x.reshape(M, D).astype(jnp.bfloat16), gamma, beta)
    return out.reshape(orig)


def _heads_per_group(n_heads, dh):
    """Largest divisor of n_heads whose concatenated width (hpg * dh) is
    <= 128 lanes, so head-group output stores are lane-dense."""
    hpg = max(1, min(n_heads, 128 // max(dh, 1)))
    while n_heads % hpg:
        hpg -= 1
    return hpg


def _attention_kernel(*refs, n_heads, hpg, tq, valid_len, has_mask):
    """One (batch element, query tile) per grid step.  Q/K/V head slices are
    read straight from the resident [1, S, 3D] block; each head group's output
    (hpg * Dh lanes, 128 for ViT-B/L) is stored directly into o_ref.  The
    1/sqrt(Dh) softmax scale is folded into the Q projection weights offline."""
    if has_mask:
        qkv_ref, m_ref, o_ref = refs
    else:
        qkv_ref, o_ref = refs
    S = qkv_ref.shape[1]
    D = qkv_ref.shape[2] // 3
    Dh = D // n_heads
    q0 = pl.multiple_of(pl.program_id(1) * tq, tq)

    if has_mask:
        bias = m_ref[0].astype(jnp.float32)                          # [1, S]
    elif valid_len is not None and valid_len < S:
        # Vision pad mask: compile-time-constant key validity, no mask DMA.
        col = jax.lax.broadcasted_iota(jnp.int32, (1, S), 1)
        bias = jnp.where(col < valid_len, 0.0, -1e9)
    else:
        bias = None                                                  # no mask

    # TODO(synk): for very long sequences (S >> 1k) add online-softmax K/V
    # tiling; at ViT/BERT sizes the per-group [tq, S] scores fit comfortably.
    for g in range(n_heads // hpg):
        outs = []
        for hh in range(hpg):
            c = (g * hpg + hh) * Dh
            q = qkv_ref[0, pl.ds(q0, tq), c:c + Dh]                  # [tq, Dh]
            k = qkv_ref[0, :, D + c:D + c + Dh]                      # [S, Dh]
            v = qkv_ref[0, :, 2 * D + c:2 * D + c + Dh]              # [S, Dh]
            s = jax.lax.dot_general(q, k, (((1,), (1,)), ((), ())),
                                    preferred_element_type=jnp.float32)
            if bias is not None:
                s = s + bias
            s = s - jnp.max(s, axis=-1, keepdims=True)
            p = jnp.exp(s)
            inv = pl.reciprocal(jnp.sum(p, axis=-1, keepdims=True), approx=True)
            outs.append(jnp.dot(p.astype(jnp.bfloat16), v,
                                preferred_element_type=jnp.float32) * inv)
        grp = outs[0] if hpg == 1 else jnp.concatenate(outs, axis=-1)
        o_ref[0, :, g * hpg * Dh:(g + 1) * hpg * Dh] = grp.astype(o_ref.dtype)


def attention(qkv, n_heads, mask_b1s=None, valid_len=None, tq=128):
    """qkv: [B, S, 3*D] bf16 straight from the QKV projection (Q scale already
    folded into the weights).  mask_b1s: optional [B, 1, S] additive fp32 mask
    (text branch).  valid_len: static count of real (unpadded) tokens when no
    explicit mask is supplied (vision branch)."""
    B, S, threeD = qkv.shape
    D = threeD // 3
    Dh = D // n_heads
    hpg = _heads_per_group(n_heads, Dh)
    tq = _pick_tile(S, tq)
    in_specs = [pl.BlockSpec((1, S, threeD), lambda b, qi: (b, 0, 0))]
    args = [qkv]
    if mask_b1s is not None:
        in_specs.append(pl.BlockSpec((1, 1, S), lambda b, qi: (b, 0, 0)))
        args.append(mask_b1s)
    return pl.pallas_call(
        functools.partial(_attention_kernel, n_heads=n_heads, hpg=hpg, tq=tq,
                          valid_len=valid_len, has_mask=mask_b1s is not None),
        grid=(B, S // tq),
        in_specs=in_specs,
        out_specs=pl.BlockSpec((1, tq, D), lambda b, qi: (b, qi, 0)),
        out_shape=jax.ShapeDtypeStruct((B, S, D), jnp.bfloat16),
        compiler_params=_mosaic_params(("parallel", "parallel")),
    )(*args)


# ---------------------------------------------------------------------------
# Transformer pieces (glue around the kernels)
# ---------------------------------------------------------------------------

def transformer_block(x2, B, S, p, mask_b1s, valid_len, n_heads, eps):
    """x2: [B*S, D] bf16 (S already padded). Returns [B*S, D] bf16."""
    D = x2.shape[-1]
    # LN1 fused into the QKV projection (LN cached across N tiles).
    qkv = fused_ln_matmul(x2, p["ln1_g"], p["ln1_b"], p["wqkv"], p["bqkv"],
                          eps=eps)                                 # [B*S, 3D]
    # Free metadata reshape; the head split happens inside the attention kernel,
    # so no [B, H, S, Dh] tensor ever hits HBM.
    a = attention(qkv.reshape(B, S, 3 * D), n_heads,
                  mask_b1s=mask_b1s, valid_len=valid_len)          # [B, S, D]
    # Output projection with bias + residual fused into the epilogue.
    x2 = matmul_bias(a.reshape(B * S, D), p["wo"], p["bo"], residual=x2)
    # LN2 + W1 + GELU + W2 + residual fused (VMEM-budget gated).
    x2 = mlp_block(x2, p["ln2_g"], p["ln2_b"], p["w1"], p["b1"],
                   p["w2"], p["b2"], eps=eps)
    return x2


def vision_forward_features(pixel_values, vp, *, patch, n_heads):
    # pixel_values: [B, C, H, W] (NCHW). Conv2d(C, D, kernel=P, stride=P)
    # expressed as im2col + tiled Pallas matmul.
    # TODO(synk): im2col reorder stays in XLA (bf16 to halve its HBM traffic);
    # folding it into the matmul's input DMA needs an Element-gather BlockSpec.
    B, C, H, W = pixel_values.shape
    P = patch
    nh, nw = H // P, W // P
    x = pixel_values.astype(jnp.bfloat16).reshape(B, C, nh, P, nw, P)
    x = x.transpose(0, 2, 4, 1, 3, 5).reshape(B * nh * nw, C * P * P)
    x = matmul_bias(x, vp["patch_w"], vp["patch_b"])               # [B*nP, D]
    D = x.shape[-1]
    x = x.reshape(B, nh * nw, D)

    cls = jnp.broadcast_to(vp["cls"], (B, 1, D)).astype(jnp.bfloat16)
    x = jnp.concatenate([cls, x], axis=1) + vp["pos"]              # [B, S, D]
    S = x.shape[1]
    S_pad = _pad_seq_len(S)          # large, MXU-aligned row tiles (review #1)
    if S_pad != S:
        x = jnp.pad(x, ((0, 0), (0, S_pad - S), (0, 0)))

    x2 = x.reshape(B * S_pad, D)
    for blk in vp["blocks"]:
        x2 = transformer_block(x2, B, S_pad, blk, None, S, n_heads, eps=1e-6)
    x2 = layernorm(x2, vp["lnf_g"], vp["lnf_b"], eps=1e-6)
    return x2.reshape(B, S_pad, D)[:, :S, :]


def text_forward_text(input_ids, attention_mask, tp, *, n_heads):
    B, S = input_ids.shape
    # TODO(synk): embedding gather kept in plain JAX (data-dependent gather).
    x = jnp.take(tp["tok_emb"], input_ids, axis=0) + tp["pos_emb"][None, :S, :]
    D = x.shape[-1]
    S_pad = _pad_seq_len(S)
    if S_pad != S:
        x = jnp.pad(x, ((0, 0), (0, S_pad - S), (0, 0)))
        attention_mask = jnp.pad(attention_mask, ((0, 0), (0, S_pad - S)))
    x2 = layernorm(x.reshape(B * S_pad, D), tp["emb_ln_g"], tp["emb_ln_b"],
                   eps=1e-12)                                      # BERT-style eps
    mask_b1s = jnp.where(attention_mask > 0, 0.0, -1e9).astype(jnp.float32)
    mask_b1s = mask_b1s[:, None, :]                                # [B, 1, S_pad]
    for blk in tp["blocks"]:
        x2 = transformer_block(x2, B, S_pad, blk, mask_b1s, None, n_heads,
                               eps=1e-12)
    return x2.reshape(B, S_pad, D)[:, :S, :]


def lavis_encoder_forward(params, pixel_values=None, input_ids=None,
                          attention_mask=None):
    """Mirrors LavisEncoder.forward (mapper=None, use_normalized unused)."""
    if pixel_values is not None:
        last_hidden_state = vision_forward_features(
            pixel_values, params["vision"],
            patch=params["patch"], n_heads=params["n_heads"])
        pooled = last_hidden_state[:, 0, :]
        pooled = matmul_bias(pooled, params["vision_head_w"],
                             params["vision_head_b"])
    else:
        last_hidden_state = text_forward_text(
            input_ids, attention_mask, params["text"],
            n_heads=params["n_heads"])
        pooled = last_hidden_state[:, 0, :]
        pooled = matmul_bias(pooled, params["text_head_w"],
                             params["text_head_b"])
    return (last_hidden_state.astype(jnp.float32),
            pooled.astype(jnp.float32))


# ---------------------------------------------------------------------------
# Deterministic parameter construction (weights bf16, LN/bias params fp32)
# ---------------------------------------------------------------------------

def init_params(key, *, C, img, patch, D, n_heads, mlp, n_layers, proj,
                vocab, max_text_len):
    keys = iter(jax.random.split(key, 256))

    def nrm(shape, scale=0.02):
        return (scale * jax.random.normal(next(keys), shape,
                                          jnp.float32)).astype(jnp.bfloat16)

    def zeros(shape):
        return jnp.zeros(shape, jnp.float32)

    def ones(shape):
        return jnp.ones(shape, jnp.float32)

    # Fold the 1/sqrt(Dh) attention scale into the Q projection columns and
    # bias (mathematically identical; removes an S*S multiply per head per
    # batch element from the attention kernel).
    dh = D // n_heads
    qscale = 1.0 / math.sqrt(dh)
    col_scale = jnp.concatenate(
        [jnp.full((D,), qscale, jnp.float32), jnp.ones((2 * D,), jnp.float32)])

    def block():
        wqkv = (nrm((D, 3 * D)).astype(jnp.float32)
                * col_scale).astype(jnp.bfloat16)
        bqkv = zeros((1, 3 * D)) * col_scale
        return dict(
            ln1_g=ones((1, D)), ln1_b=zeros((1, D)),
            wqkv=wqkv, bqkv=bqkv,
            wo=nrm((D, D)), bo=zeros((1, D)),
            ln2_g=ones((1, D)), ln2_b=zeros((1, D)),
            w1=nrm((D, mlp)), b1=zeros((1, mlp)),
            w2=nrm((mlp, D)), b2=zeros((1, D)),
        )

    n_patches = (img // patch) ** 2
    vision = dict(
        patch_w=nrm((C * patch * patch, D)), patch_b=zeros((1, D)),
        cls=nrm((1, 1, D)),
        pos=nrm((1, 1 + n_patches, D)),
        blocks=[block() for _ in range(n_layers)],
        lnf_g=ones((1, D)), lnf_b=zeros((1, D)),
    )
    text = dict(
        tok_emb=nrm((vocab, D)),
        pos_emb=nrm((max_text_len, D)),
        emb_ln_g=ones((1, D)), emb_ln_b=zeros((1, D)),
        blocks=[block() for _ in range(n_layers)],
    )
    return dict(
        vision=vision, text=text,
        vision_head_w=nrm((D, proj)), vision_head_b=zeros((1, proj)),
        text_head_w=nrm((D, proj)), text_head_b=zeros((1, proj)),
        patch=patch, n_heads=n_heads,
    )


# ---------------------------------------------------------------------------
# Demo
# ---------------------------------------------------------------------------

if __name__ == "__main__":
    B, C, IMG, PATCH = 2, 4, 16, 8
    D, HEADS, MLP, LAYERS, PROJ = 32, 4, 64, 2, 16
    VOCAB, TSEQ = 64, 8

    root = jax.random.PRNGKey(0)
    k_params, k_px, k_ids = jax.random.split(root, 3)

    params = init_params(k_params, C=C, img=IMG, patch=PATCH, D=D,
                         n_heads=HEADS, mlp=MLP, n_layers=LAYERS, proj=PROJ,
                         vocab=VOCAB, max_text_len=TSEQ)

    pixel_values = jax.random.normal(k_px, (B, C, IMG, IMG), jnp.float32)  # NCHW
    input_ids = jax.random.randint(k_ids, (B, TSEQ), 0, VOCAB)
    attention_mask = jnp.concatenate(
        [jnp.ones((B, TSEQ - 2), jnp.int32), jnp.zeros((B, 2), jnp.int32)],
        axis=1)

    # Vision branch (pixel_values is not None)
    v_hidden, v_pooled = lavis_encoder_forward(params, pixel_values=pixel_values)
    # Text branch (pixel_values is None)
    t_hidden, t_pooled = lavis_encoder_forward(
        params, input_ids=input_ids, attention_mask=attention_mask)

    jax.block_until_ready((v_hidden, v_pooled, t_hidden, t_pooled))

    assert v_hidden.shape == (B, 1 + (IMG // PATCH) ** 2, D)
    assert v_pooled.shape == (B, PROJ)
    assert t_hidden.shape == (B, TSEQ, D)
    assert t_pooled.shape == (B, PROJ)
    assert bool(jnp.isfinite(v_pooled).all())
    assert bool(jnp.isfinite(t_pooled).all())
    print("KERNEL_OK")
</pallas_src>

<mosaic_0001>
module attributes {stable_mosaic.version = 11 : i64} {
  func.func @_matmul_kernel(%arg0: i32, %arg1: i32, %arg2: i32, %arg3: memref<8x256xbf16, #tpu.memory_space<vmem>>, %arg4: memref<256x32xbf16, #tpu.memory_space<vmem>>, %arg5: memref<1x32xf32, #tpu.memory_space<vmem>>, %arg6: memref<8x32xbf16, #tpu.memory_space<vmem>>, %arg7: memref<8x32xf32, #tpu.memory_space<vmem>>) attributes {dimension_semantics = [#tpu.dimension_semantics<parallel>, #tpu.dimension_semantics<parallel>, #tpu.dimension_semantics<arbitrary>], iteration_bounds = array<i64: 1, 1, 1>, scalar_prefetch = 0 : i64, scratch_operands = 1 : i64, tpu.core_type = #tpu.core_type<tc>, window_params = [{transform_indices = @transform_0, window_bounds = array<i64: 8, 256>}, {transform_indices = @transform_1, window_bounds = array<i64: 256, 32>}, {transform_indices = @transform_2, window_bounds = array<i64: 1, 32>}, {transform_indices = @transform_3, window_bounds = array<i64: 8, 32>}]} {
    %c0_i32 = arith.constant 0 : i32
    %0 = arith.cmpi eq, %arg2, %c0_i32 : i32
    %1 = arith.extui %0 : i1 to i32
    %c0_i32_0 = arith.constant 0 : i32
    %2 = arith.cmpi ne, %1, %c0_i32_0 : i32
    scf.if %2 {
      %cst_10 = arith.constant 0.000000e+00 : f32
      %12 = vector.broadcast %cst_10 : f32 to vector<8x32xf32>
      %c0_11 = arith.constant 0 : index
      %c0_12 = arith.constant 0 : index
      %13 = vector.load %arg7[%c0_11, %c0_12] : memref<8x32xf32, #tpu.memory_space<vmem>>, vector<8x32xf32>
      tpu.vector_store %arg7[%c0_11, %c0_12], %12 {strides = array<i32>} : memref<8x32xf32, #tpu.memory_space<vmem>>, vector<8x32xf32>,
    } else {
    }
    %c0 = arith.constant 0 : index
    %c0_1 = arith.constant 0 : index
    %3 = vector.load %arg7[%c0, %c0_1] : memref<8x32xf32, #tpu.memory_space<vmem>>, vector<8x32xf32>
    %c0_2 = arith.constant 0 : index
    %c0_3 = arith.constant 0 : index
    %4 = vector.load %arg3[%c0_2, %c0_3] : memref<8x256xbf16, #tpu.memory_space<vmem>>, vector<8x256xbf16>
    %c0_4 = arith.constant 0 : index
    %c0_5 = arith.constant 0 : index
    %5 = vector.load %arg4[%c0_4, %c0_5] : memref<256x32xbf16, #tpu.memory_space<vmem>>, vector<256x32xbf16>
    %cst = arith.constant dense<0.000000e+00> : vector<8x32xf32>
    %6 = tpu.matmul %4, %5, %cst {dimension_numbers = #tpu.dot_dimension_numbers<[1], [0], [0], [1], [0, 0, 1, 1], [], []>} : vector<8x256xbf16>, vector<256x32xbf16>, vector<8x32xf32> -> vector<8x32xf32>
    %7 = arith.addf %3, %6 : vector<8x32xf32>
    %c0_6 = arith.constant 0 : index
    %c0_7 = arith.constant 0 : index
    %8 = vector.load %arg7[%c0_6, %c0_7] : memref<8x32xf32, #tpu.memory_space<vmem>>, vector<8x32xf32>
    tpu.vector_store %arg7[%c0_6, %c0_7], %7 {strides = array<i32>} : memref<8x32xf32, #tpu.memory_space<vmem>>, vector<8x32xf32>,
    %c0_i32_8 = arith.constant 0 : i32
    %9 = arith.cmpi eq, %arg2, %c0_i32_8 : i32
    %10 = arith.extui %9 : i1 to i32
    %c0_i32_9 = arith.constant 0 : i32
    %11 = arith.cmpi ne, %10, %c0_i32_9 : i32
    scf.if %11 {
      %c0_10 = arith.constant 0 : index
      %c0_11 = arith.constant 0 : index
      %12 = vector.load %arg7[%c0_10, %c0_11] : memref<8x32xf32, #tpu.memory_space<vmem>>, vector<8x32xf32>
      %c0_12 = arith.constant 0 : index
      %c0_13 = arith.constant 0 : index
      %13 = vector.load %arg5[%c0_12, %c0_13] : memref<1x32xf32, #tpu.memory_space<vmem>>, vector<1x32xf32>
      %14 = vector.broadcast %13 : vector<1x32xf32> to vector<8x32xf32>
      %15 = arith.addf %12, %14 : vector<8x32xf32>
      %16 = arith.truncf %15 : vector<8x32xf32> to vector<8x32xbf16>
      %c0_14 = arith.constant 0 : index
      %c0_15 = arith.constant 0 : index
      %17 = vector.load %arg6[%c0_14, %c0_15] : memref<8x32xbf16, #tpu.memory_space<vmem>>, vector<8x32xbf16>
      tpu.vector_store %arg6[%c0_14, %c0_15], %16 {strides = array<i32>} : memref<8x32xbf16, #tpu.memory_space<vmem>>, vector<8x32xbf16>,
    } else {
    }
    return
  }
  func.func @transform_0(%arg0: i32, %arg1: i32, %arg2: i32) -> (i32, i32) {
    %c0_i32 = arith.constant 0 : i32
    return %arg0, %arg2 : i32, i32
  }
  func.func @transform_1(%arg0: i32, %arg1: i32, %arg2: i32) -> (i32, i32) {
    %c0_i32 = arith.constant 0 : i32
    return %arg2, %arg1 : i32, i32
  }
  func.func @transform_2(%arg0: i32, %arg1: i32, %arg2: i32) -> (i32, i32) {
    %c0_i32 = arith.constant 0 : i32
    %c0_i32_0 = arith.constant 0 : i32
    return %c0_i32, %arg1 : i32, i32
  }
  func.func @transform_3(%arg0: i32, %arg1: i32, %arg2: i32) -> (i32, i32) {
    %c0_i32 = arith.constant 0 : i32
    return %arg0, %arg1 : i32, i32
  }
}

</mosaic_0001>

<llo_original>
// kernel: tpu_custom_call.1
$region0: #{tpu_custom_call.1}
  #allocation0 [shape = 'u32[]', space=smem, size = 0x4, offset = 0x4, fixed_abs, tag = 'smem constant byte address 0x4 - core index']
  #allocation1 [shape = 'u32[144,128]{1,0:T(1,128)}', space=vmem, size = 0x12000, scoped, tag = 'internal scratch']
  #allocation2 [shape = 'f32[8,32]{1,0:T(8,128)}', space=vmem, size = 0x1000, scoped, tag = 'scratch operand']
  %s0 = inlined_call_operand.hbm [shape: bf16[8,256], index: 0, kind: input, shape index: {}]
  %s1 = inlined_call_operand.hbm [shape: bf16[256,32], index: 1, kind: input, shape index: {}]
  %s2 = inlined_call_operand.hbm [shape: f32[1,32], index: 2, kind: input, shape index: {}]
  %s3 = inlined_call_operand.hbm [shape: bf16[8,32], index: 3, kind: output, shape index: {}]
  %s4 = sld [smem:[#allocation0]]
  $region42: #{tpu_custom_call.1} parent=0
    _
  %s6 = ssub.s32 1, %s4
  %s7 = scalar_select 0, %s6, %s4
  $region1: #{tpu_custom_call.1} parent=0
    #allocation3 [shape = 'u8[4096]{0}', space=vmem, size = 0x1000, scoped, tag = 'input window, operand 0, single buffered']
    #allocation4 [shape = 's32[1]{0}', space=sflag, size = 0x4, scoped, tag = 'scoped memory for tpu_custom_call.1']
    #allocation5 [shape = 's32[1]{0}', space=sflag, size = 0x4, scoped, tag = 'scoped memory for tpu_custom_call.1']
    #allocation6 [shape = 'u8[65536]{0}', space=vmem, size = 0x10000, scoped, tag = 'input window, operand 1, single buffered']
    #allocation7 [shape = 's32[1]{0}', space=sflag, size = 0x4, scoped, tag = 'scoped memory for tpu_custom_call.1']
    #allocation8 [shape = 'u8[512]{0}', space=vmem, size = 0x400, scoped, tag = 'input window, operand 2, single buffered']
    #allocation9 [shape = 'u8[2048]{0}', space=vmem, size = 0x800, scoped, tag = 'output window, operand 0, single buffered']
    %8 = vsyncpa [#allocation4], 0
    %9 = vsyncpa [#allocation7], 0
    %10 = vsyncpa [#allocation5], 0
    // Predicated region
    $region2: #{tpu_custom_call.1} parent=1 // pred_check
      _
    $region3: #{tpu_custom_call.1} parent=1 // pred_check_branch
      %12 = sbr.rel (0) target = $region5
    $region4: #{tpu_custom_call.1} parent=1 // pred_region
      %s14 = ssub.s32 128, 128
      %15 = vsyncadd [#allocation4], %s14
      %s17 = sshll.u32 [#allocation3], 4
      %s18 = int_to_ptr.vmem [resolvable:$true] %s17
      %20 = dma.hbm_to_vmem [thread:$0]  %s0, 128, %s18, [#allocation4]
    $region5: #{tpu_custom_call.1} parent=1 // pred_fallthru
      _
    // Predicated region
    $region6: #{tpu_custom_call.1} parent=1 // pred_check
      _
    $region7: #{tpu_custom_call.1} parent=1 // pred_check_branch
      %22 = sbr.rel (0) target = $region9
    $region8: #{tpu_custom_call.1} parent=1 // pred_region
      %s24 = ssub.s32 2048, 2048
      %25 = vsyncadd [#allocation7], %s24
      %s26 = sshll.u32 [#allocation6], 4
      %s27 = int_to_ptr.vmem [resolvable:$true] %s26
      %32 = dma.hbm_to_vmem [thread:$0]  %s1, 2048, %s27, [#allocation7], 64, 64, 4
    $region9: #{tpu_custom_call.1} parent=1 // pred_fallthru
      _
    // Predicated region
    $region10: #{tpu_custom_call.1} parent=1 // pred_check
      _
    $region11: #{tpu_custom_call.1} parent=1 // pred_check_branch
      %34 = sbr.rel (0) target = $region13
    $region12: #{tpu_custom_call.1} parent=1 // pred_region
      %s36 = ssub.s32 16, 16
      %37 = vsyncadd [#allocation7], %s36
      %s39 = sshll.u32 [#allocation8], 4
      %s40 = int_to_ptr.vmem [resolvable:$true] %s39
      %42 = dma.hbm_to_vmem [thread:$0]  %s2, 16, %s40, [#allocation7]
    $region13: #{tpu_custom_call.1} parent=1 // pred_fallthru
      _
    // Predicated region
    $region14: #{tpu_custom_call.1} parent=1 // pred_check
      _
    $region15: #{tpu_custom_call.1} parent=1 // pred_check_branch
      %44 = sbr.rel (0) target = $region17
    $region16: #{tpu_custom_call.1} parent=1 // pred_region
      %45 = dma.done [#allocation4], 128
    $region17: #{tpu_custom_call.1} parent=1 // pred_fallthru
      _
    // Predicated region
    $region18: #{tpu_custom_call.1} parent=1 // pred_check
      _
    $region19: #{tpu_custom_call.1} parent=1 // pred_check_branch
      %47 = sbr.rel (0) target = $region21
    $region20: #{tpu_custom_call.1} parent=1 // pred_region
      %48 = dma.done [#allocation7], 2048
    $region21: #{tpu_custom_call.1} parent=1 // pred_fallthru
      _
    // Predicated region
    $region22: #{tpu_custom_call.1} parent=1 // pred_check
      _
    $region23: #{tpu_custom_call.1} parent=1 // pred_check_branch
      %50 = sbr.rel (0) target = $region25
    $region24: #{tpu_custom_call.1} parent=1 // pred_region
      %51 = dma.done [#allocation7], 16
    $region25: #{tpu_custom_call.1} parent=1 // pred_fallthru
      _
    %p53 = scmp.eq.s32.totalorder 0, 0
    // Predicated region
    $region26: #{tpu_custom_call.1} parent=1 // pred_check
      %p54 = pneg %p53
    $region27: #{tpu_custom_call.1} parent=1 // pred_check_branch
      %56 = sbr.rel (%p54) target = $region29
    $region28: #{tpu_custom_call.1} parent=1 // pred_region
      %vm57 = vcmask 261120
      %58 = vst.msk [vmem:[#allocation2] sm:$0xff] %vm57, 0.0
    $region29: #{tpu_custom_call.1} parent=1 // pred_fallthru
      _
    %v59 = vld [vmem:[#allocation2] sm:$0xff]
    %v60 = vld [vmem:[#allocation3] sm:$0xff]
    %v61 = vld [vmem:[#allocation6] sm:$0xf]
    %v62 = vld [vmem:[#allocation6 + $0x4] sm:$0xf]
    %v63 = vld [vmem:[#allocation6 + $0x8] sm:$0xf]
    %v64 = vld [vmem:[#allocation6 + $0xc] sm:$0xf]
    %v65 = vld [vmem:[#allocation6 + $0x10] sm:$0xf]
    %v66 = vld [vmem:[#allocation6 + $0x14] sm:$0xf]
    %v67 = vld [vmem:[#allocation6 + $0x18] sm:$0xf]
    %v68 = vld [vmem:[#allocation6 + $0x1c] sm:$0xf]
    %v69 = vld [vmem:[#allocation6 + $0x20] sm:$0xf]
    %v70 = vld [vmem:[#allocation6 + $0x24] sm:$0xf]
    %v71 = vld [vmem:[#allocation6 + $0x28] sm:$0xf]
    %v72 = vld [vmem:[#allocation6 + $0x2c] sm:$0xf]
    %v73 = vld [vmem:[#allocation6 + $0x30] sm:$0xf]
    %v74 = vld [vmem:[#allocation6 + $0x34] sm:$0xf]
    %v75 = vld [vmem:[#allocation6 + $0x38] sm:$0xf]
    %v76 = vld [vmem:[#allocation6 + $0x3c] sm:$0xf]
    %v77 = vld [vmem:[#allocation6 + $0x40] sm:$0xf]
    %v78 = vld [vmem:[#allocation6 + $0x44] sm:$0xf]
    %v79 = vld [vmem:[#allocation6 + $0x48] sm:$0xf]
    %v80 = vld [vmem:[#allocation6 + $0x4c] sm:$0xf]
    %v81 = vld [vmem:[#allocation6 + $0x50] sm:$0xf]
    %v82 = vld [vmem:[#allocation6 + $0x54] sm:$0xf]
    %v83 = vld [vmem:[#allocation6 + $0x58] sm:$0xf]
    %v84 = vld [vmem:[#allocation6 + $0x5c] sm:$0xf]
    %v85 = vld [vmem:[#allocation6 + $0x60] sm:$0xf]
    %v86 = vld [vmem:[#allocation6 + $0x64] sm:$0xf]
    %v87 = vld [vmem:[#allocation6 + $0x68] sm:$0xf]
    %v88 = vld [vmem:[#allocation6 + $0x6c] sm:$0xf]
    %v89 = vld [vmem:[#allocation6 + $0x70] sm:$0xf]
    %v90 = vld [vmem:[#allocation6 + $0x74] sm:$0xf]
    %v91 = vld [vmem:[#allocation6 + $0x78] sm:$0xf]
    %v92 = vld [vmem:[#allocation6 + $0x7c] sm:$0xf]
    %v94 = vunpack.c.l.b16 %v60
    %v95 = vunpack.c.h.b16 %v60
    %v96 = vpack.c.b16 %v94, %v94
    %v97 = vpack.c.b16 %v95, %v95
    %v132 = vunpack.c.l.b16 %v61
    %v133 = vunpack.c.l.b16 %v62
    %v134 = vunpack.c.l.b16 %v63
    %v135 = vunpack.c.l.b16 %v64
    %v136 = vunpack.c.l.b16 %v65
    %v137 = vunpack.c.l.b16 %v66
    %v138 = vunpack.c.l.b16 %v67
    %v139 = vunpack.c.l.b16 %v68
    %v140 = vunpack.c.l.b16 %v69
    %v141 = vunpack.c.l.b16 %v70
    %v142 = vunpack.c.l.b16 %v71
    %v143 = vunpack.c.l.b16 %v72
    %v144 = vunpack.c.l.b16 %v73
    %v145 = vunpack.c.l.b16 %v74
    %v146 = vunpack.c.l.b16 %v75
    %v147 = vunpack.c.l.b16 %v76
    %v148 = vunpack.c.l.b16 %v77
    %v149 = vunpack.c.l.b16 %v78
    %v150 = vunpack.c.l.b16 %v79
    %v151 = vunpack.c.l.b16 %v80
    %v152 = vunpack.c.l.b16 %v81
    %v153 = vunpack.c.l.b16 %v82
    %v154 = vunpack.c.l.b16 %v83
    %v155 = vunpack.c.l.b16 %v84
    %v156 = vunpack.c.l.b16 %v85
    %v157 = vunpack.c.l.b16 %v86
    %v158 = vunpack.c.l.b16 %v87
    %v159 = vunpack.c.l.b16 %v88
    %v160 = vunpack.c.l.b16 %v89
    %v161 = vunpack.c.l.b16 %v90
    %v162 = vunpack.c.l.b16 %v91
    %v163 = vunpack.c.l.b16 %v92
    %v164 = vpack.c.b16 %v133, %v132
    %v165 = vpack.c.b16 %v135, %v134
    %v166 = vpack.c.b16 %v137, %v136
    %v167 = vpack.c.b16 %v139, %v138
    %v168 = vpack.c.b16 %v141, %v140
    %v169 = vpack.c.b16 %v143, %v142
    %v170 = vpack.c.b16 %v145, %v144
    %v171 = vpack.c.b16 %v147, %v146
    %v172 = vpack.c.b16 %v149, %v148
    %v173 = vpack.c.b16 %v151, %v150
    %v174 = vpack.c.b16 %v153, %v152
    %v175 = vpack.c.b16 %v155, %v154
    %v176 = vpack.c.b16 %v157, %v156
    %v177 = vpack.c.b16 %v159, %v158
    %v178 = vpack.c.b16 %v161, %v160
    %v179 = vpack.c.b16 %v163, %v162
    %196 = vmatprep.subr.bf16.mxu0 0
    %197 = vmatpush1.bf16.msra.mxu0 %v164
    %198 = vmatprep.subr.bf16.mxu0 0
    %199 = vmatpush1.bf16.msra.mxu0 %v165
    %200 = vmatprep.subr.bf16.mxu0 0
    %201 = vmatpush1.bf16.msra.mxu0 %v166
    %202 = vmatprep.subr.bf16.mxu0 0
    %203 = vmatpush1.bf16.msra.mxu0 %v167
    %204 = vmatprep.subr.bf16.mxu0 0
    %205 = vmatpush1.bf16.msra.mxu0 %v168
    %206 = vmatprep.subr.bf16.mxu0 0
    %207 = vmatpush1.bf16.msra.mxu0 %v169
    %208 = vmatprep.subr.bf16.mxu0 0
    %209 = vmatpush1.bf16.msra.mxu0 %v170
    %210 = vmatprep.subr.bf16.mxu0 0
    %211 = vmatpush1.bf16.msra.mxu0 %v171
    %212 = vmatprep.subr.bf16.mxu0 0
    %213 = vmatpush1.bf16.msra.mxu0 %v172
    %214 = vmatprep.subr.bf16.mxu0 0
    %215 = vmatpush1.bf16.msra.mxu0 %v173
    %216 = vmatprep.subr.bf16.mxu0 0
    %217 = vmatpush1.bf16.msra.mxu0 %v174
    %218 = vmatprep.subr.bf16.mxu0 0
    %219 = vmatpush1.bf16.msra.mxu0 %v175
    %220 = vmatprep.subr.bf16.mxu0 0
    %221 = vmatpush1.bf16.msra.mxu0 %v176
    %222 = vmatprep.subr.bf16.mxu0 0
    %223 = vmatpush1.bf16.msra.mxu0 %v177
    %224 = vmatprep.subr.bf16.mxu0 0
    %225 = vmatpush1.bf16.msra.mxu0 %v178
    %226 = vmatprep.subr.bf16.mxu0 0
    %227 = vmatpush1.bf16.msra.mxu0 %v179
    %228 = vmatprep.mubr.bf16.mxu0 %v97
    %229 = vmatmul.mubr.bf16.gmra.mrb[0].mxu0 %v96
    %v230 = vpop.f32.mrb[0].mxu0
    %v231 = vadd.f32 0.0, %v230
    %v232 = vpop.f32.mrb[0].mxu0
    %v233 = vpop.f32.mrb[0].mxu0
    %v234 = vpop.f32.mrb[0].mxu0
    %235 = vdwg.mxu0
    %v236 = vadd.f32 %v59, %v231
    %vm237 = vcmask 261120
    %238 = vst.msk [vmem:[#allocation2] sm:$0xff] %vm237, %v236
    // Predicated region
    $region30: #{tpu_custom_call.1} parent=1 // pred_check
      %p239 = pneg %p53
    $region31: #{tpu_custom_call.1} parent=1 // pred_check_branch
      %241 = sbr.rel (%p239) target = $region33
    $region32: #{tpu_custom_call.1} parent=1 // pred_region
      %v242 = vld [vmem:[#allocation2] sm:$0xff]
      %v243 = vld [vmem:[#allocation8] sm:$0x1]
      %v245 = vlaneseq
      %v246 = vshrl.u32 %v245, 7
      %v247 = vsub.s32 0, %v246
      %v248 = vrot.slane %v243, %v247
      %v250 = vadd.f32 %v242, %v248
      %v251 = vpack.c.bf16 %v250, %v250
      %vm252 = vcmask 257024
      %253 = vst.msk [vmem:[#allocation9] sm:$0xf] %vm252, %v251
    $region33: #{tpu_custom_call.1} parent=1 // pred_fallthru
      _
    // Predicated region
    $region34: #{tpu_custom_call.1} parent=1 // pred_check
      _
    $region35: #{tpu_custom_call.1} parent=1 // pred_check_branch
      %255 = sbr.rel (0) target = $region37
    $region36: #{tpu_custom_call.1} parent=1 // pred_region
      %s257 = ssub.s32 64, 64
      %258 = vsyncadd [#allocation5], %s257
      %s260 = sshll.u32 [#allocation9], 4
      %s261 = int_to_ptr.vmem [resolvable:$true] %s260
      %263 = dma.vmem_to_hbm [thread:$0]  %s261, 64, %s3, [#allocation5]
    $region37: #{tpu_custom_call.1} parent=1 // pred_fallthru
      _
    // Predicated region
    $region38: #{tpu_custom_call.1} parent=1 // pred_check
      _
    $region39: #{tpu_custom_call.1} parent=1 // pred_check_branch
      %265 = sbr.rel (0) target = $region41
    $region40: #{tpu_custom_call.1} parent=1 // pred_region
      %266 = dma.done [#allocation5], 64
    $region41: #{tpu_custom_call.1} parent=1 // pred_fallthru
      _
    %267 = vsyncpa [#allocation4], 1
    %268 = vsyncpa [#allocation7], 1
    %269 = vsyncpa [#allocation5], 1

</llo_original>
